<compile_context>
chip_gen: v6e
topology: v6e:2x2x1
jax: 0.10.0
libtpu: 0.0.40
codegen_flags: <defaults>
</compile_context>

<pallas_src>
import jax
import jax.numpy as jnp
from jax.experimental import pallas as pl
from jax.experimental.pallas import tpu as pltpu

OUT_FEATURES = 28 * 28          # 784  (logical output width)
OUT_PADDED = 896                # 7 * 128 -> lane-dense stores
TM_MAX = 512                    # batch tile: multiple of 256, VMEM-safe on v7x


def decoder_kernel(x_ref, w_ref, b_ref, o_ref):
    # x_ref: (TM, D) bf16, w_ref: (D, 896) bf16, b_ref: (1, 896) f32,
    # o_ref: (TM, 896) f32
    y = jnp.dot(x_ref[...], w_ref[...], preferred_element_type=jnp.float32)
    y = y + b_ref[...]                    # broadcast bias over batch (f32 epilogue)
    o_ref[...] = jnp.maximum(y, 0.0)      # ReLU


def prepare_params(w_t, b):
    """Pad (D, 784)/(1, 784) params to lane-dense 896 cols; cast W to bf16.

    Padded columns are zero, so ReLU(0 + 0) = 0 and the wrapper slice drops them.
    """
    D = w_t.shape[0]
    w_pad = jnp.zeros((D, OUT_PADDED), jnp.float32).at[:, :OUT_FEATURES].set(w_t)
    b_pad = jnp.zeros((1, OUT_PADDED), jnp.float32).at[:, :OUT_FEATURES].set(b)
    return w_pad.astype(jnp.bfloat16), b_pad


def decoder_forward(x, w_pad_bf16, b_pad):
    """x: (B, D) f32 -> (B, 1, 28, 28) f32.  Params from prepare_params()."""
    B, D = x.shape
    TM = B if B <= TM_MAX else TM_MAX
    grid_m = pl.cdiv(B, TM)

    x_bf16 = x.astype(jnp.bfloat16)

    cost = pl.CostEstimate(
        flops=2 * B * D * OUT_FEATURES,
        transcendentals=0,
        bytes_accessed=(B * D * 2                 # x (bf16)
                        + D * OUT_PADDED * 2      # W (bf16)
                        + OUT_PADDED * 4          # bias (f32)
                        + B * OUT_PADDED * 4),    # output (f32)
    )

    out_flat = pl.pallas_call(
        decoder_kernel,
        out_shape=jax.ShapeDtypeStruct((B, OUT_PADDED), jnp.float32),
        grid_spec=pltpu.PrefetchScalarGridSpec(
            num_scalar_prefetch=0,
            grid=(grid_m,),
            in_specs=[
                pl.BlockSpec((TM, D), lambda i: (i, 0)),            # x tile
                pl.BlockSpec((D, OUT_PADDED), lambda i: (0, 0)),    # W, resident
                pl.BlockSpec((1, OUT_PADDED), lambda i: (0, 0)),    # bias, resident
            ],
            out_specs=pl.BlockSpec((TM, OUT_PADDED), lambda i: (i, 0)),
        ),
        compiler_params=pltpu.CompilerParams(
            dimension_semantics=("parallel",),     # independent batch tiles
        ),
        cost_estimate=cost,
    )(x_bf16, w_pad_bf16, b_pad)

    # Drop lane padding, then nn.Unflatten(dim=1, (1, 28, 28)).
    return out_flat[:, :OUT_FEATURES].reshape(B, 1, 28, 28)


def init_params(key, encoded_space_dim):
    """Deterministic init mimicking nn.Linear default (uniform +/- 1/sqrt(fan_in))."""
    k_w, k_b = jax.random.split(key)
    bound = 1.0 / jnp.sqrt(jnp.float32(encoded_space_dim))
    # PyTorch weight is (out, in); we store its transpose (in, out) for x @ W.
    w_t = jax.random.uniform(
        k_w, (encoded_space_dim, OUT_FEATURES), jnp.float32, -bound, bound
    )
    b = jax.random.uniform(k_b, (1, OUT_FEATURES), jnp.float32, -bound, bound)
    return w_t, b


def _reference(x, w_t, b):
    return jnp.maximum(x @ w_t + b, 0.0).reshape(x.shape[0], 1, 28, 28)


if __name__ == "__main__":
    key = jax.random.PRNGKey(0)
    k_x, k_p, k_x2 = jax.random.split(key, 3)

    encoded_space_dim = 32   # fc2_input_dim is unused by the module's forward
    w_t, b = init_params(k_p, encoded_space_dim)
    w_pad, b_pad = prepare_params(w_t, b)

    # Small demo batch (single tile).
    batch = 2
    x = jax.random.normal(k_x, (batch, encoded_space_dim), jnp.float32)
    out = jax.block_until_ready(decoder_forward(x, w_pad, b_pad))

    assert out.shape == (batch, 1, 28, 28), out.shape
    assert out.dtype == jnp.float32, out.dtype
    # bf16 operands with f32 accumulation -> loose tolerance vs f32 reference.
    assert jnp.allclose(out, _reference(x, w_t, b), atol=5e-2, rtol=5e-2)

    # Larger ragged batch to exercise the tiled (multi-grid-step) path.
    batch2 = 600   # > TM_MAX, not a multiple of TM -> padded last tile
    x2 = jax.random.normal(k_x2, (batch2, encoded_space_dim), jnp.float32)
    out2 = jax.block_until_ready(decoder_forward(x2, w_pad, b_pad))
    assert out2.shape == (batch2, 1, 28, 28), out2.shape
    assert jnp.allclose(out2, _reference(x2, w_t, b), atol=5e-2, rtol=5e-2)

    print("KERNEL_OK")
</pallas_src>

<mosaic_0001>
module attributes {stable_mosaic.version = 11 : i64} {
  func.func @decoder_kernel(%arg0: i32, %arg1: memref<2x32xbf16, #tpu.memory_space<vmem>>, %arg2: memref<32x896xbf16, #tpu.memory_space<vmem>>, %arg3: memref<1x896xf32, #tpu.memory_space<vmem>>, %arg4: memref<2x896xf32, #tpu.memory_space<vmem>>) attributes {dimension_semantics = [#tpu.dimension_semantics<parallel>], iteration_bounds = array<i64: 1>, scalar_prefetch = 0 : i64, scratch_operands = 0 : i64, tpu.core_type = #tpu.core_type<tc>, window_params = [{transform_indices = @transform_0, window_bounds = array<i64: 2, 32>}, {pipeline_mode = #tpu.pipeline_mode<synchronous>, transform_indices = @transform_1, window_bounds = array<i64: 32, 896>}, {pipeline_mode = #tpu.pipeline_mode<synchronous>, transform_indices = @transform_2, window_bounds = array<i64: 1, 896>}, {transform_indices = @transform_3, window_bounds = array<i64: 2, 896>}]} {
    %c0 = arith.constant 0 : index
    %c0_0 = arith.constant 0 : index
    %0 = vector.load %arg1[%c0, %c0_0] : memref<2x32xbf16, #tpu.memory_space<vmem>>, vector<2x32xbf16>
    %c0_1 = arith.constant 0 : index
    %c0_2 = arith.constant 0 : index
    %1 = vector.load %arg2[%c0_1, %c0_2] : memref<32x896xbf16, #tpu.memory_space<vmem>>, vector<32x896xbf16>
    %cst = arith.constant dense<0.000000e+00> : vector<2x896xf32>
    %2 = tpu.matmul %0, %1, %cst {dimension_numbers = #tpu.dot_dimension_numbers<[1], [0], [0], [1], [0, 0, 1, 1], [], []>} : vector<2x32xbf16>, vector<32x896xbf16>, vector<2x896xf32> -> vector<2x896xf32>
    %c0_3 = arith.constant 0 : index
    %c0_4 = arith.constant 0 : index
    %3 = vector.load %arg3[%c0_3, %c0_4] : memref<1x896xf32, #tpu.memory_space<vmem>>, vector<1x896xf32>
    %4 = vector.broadcast %3 : vector<1x896xf32> to vector<2x896xf32>
    %5 = arith.addf %2, %4 : vector<2x896xf32>
    %cst_5 = arith.constant 0.000000e+00 : f32
    %6 = vector.broadcast %cst_5 : f32 to vector<2x896xf32>
    %7 = arith.maximumf %5, %6 : vector<2x896xf32>
    %c0_6 = arith.constant 0 : index
    %c0_7 = arith.constant 0 : index
    %8 = vector.load %arg4[%c0_6, %c0_7] : memref<2x896xf32, #tpu.memory_space<vmem>>, vector<2x896xf32>
    tpu.vector_store %arg4[%c0_6, %c0_7], %7 {strides = array<i32>} : memref<2x896xf32, #tpu.memory_space<vmem>>, vector<2x896xf32>,
    return
  }
  func.func @transform_0(%arg0: i32) -> (i32, i32) {
    %c0_i32 = arith.constant 0 : i32
    %c0_i32_0 = arith.constant 0 : i32
    return %arg0, %c0_i32 : i32, i32
  }
  func.func @transform_1(%arg0: i32) -> (i32, i32) {
    %c0_i32 = arith.constant 0 : i32
    %c0_i32_0 = arith.constant 0 : i32
    %c0_i32_1 = arith.constant 0 : i32
    return %c0_i32, %c0_i32_0 : i32, i32
  }
  func.func @transform_2(%arg0: i32) -> (i32, i32) {
    %c0_i32 = arith.constant 0 : i32
    %c0_i32_0 = arith.constant 0 : i32
    %c0_i32_1 = arith.constant 0 : i32
    return %c0_i32, %c0_i32_0 : i32, i32
  }
  func.func @transform_3(%arg0: i32) -> (i32, i32) {
    %c0_i32 = arith.constant 0 : i32
    %c0_i32_0 = arith.constant 0 : i32
    return %arg0, %c0_i32 : i32, i32
  }
}

</mosaic_0001>

<llo_original>
// kernel: tpu_custom_call.1
$region0: #{tpu_custom_call.1}
  #allocation0 [shape = 'u32[]', space=smem, size = 0x4, offset = 0x4, fixed_abs, tag = 'smem constant byte address 0x4 - core index']
  #allocation1 [shape = 'u32[144,128]{1,0:T(1,128)}', space=vmem, size = 0x12000, scoped, tag = 'internal scratch']
  %s0 = inlined_call_operand.hbm [shape: bf16[2,32], index: 0, kind: input, shape index: {}]
  %s1 = inlined_call_operand.hbm [shape: bf16[32,896], index: 1, kind: input, shape index: {}]
  %s2 = inlined_call_operand.hbm [shape: f32[1,896], index: 2, kind: input, shape index: {}]
  %s3 = inlined_call_operand.hbm [shape: f32[2,896], index: 3, kind: output, shape index: {}]
  %s4 = sld [smem:[#allocation0]]
  $region34: #{tpu_custom_call.1} parent=0
    _
  %s6 = ssub.s32 1, %s4
  %s7 = scalar_select 0, %s6, %s4
  $region1: #{tpu_custom_call.1} parent=0
    #allocation2 [shape = 'u8[512]{0}', space=vmem, size = 0x400, scoped, tag = 'input window, operand 0, single buffered']
    #allocation3 [shape = 's32[1]{0}', space=sflag, size = 0x4, scoped, tag = 'scoped memory for tpu_custom_call.1']
    #allocation4 [shape = 's32[1]{0}', space=sflag, size = 0x4, scoped, tag = 'scoped memory for tpu_custom_call.1']
    #allocation5 [shape = 'u8[57344]{0}', space=vmem, size = 0xe000, scoped, tag = 'input window, operand 1, single buffered']
    #allocation6 [shape = 's32[1]{0}', space=sflag, size = 0x4, scoped, tag = 'scoped memory for tpu_custom_call.1']
    #allocation7 [shape = 'u8[3584]{0}', space=vmem, size = 0x1000, scoped, tag = 'input window, operand 2, single buffered']
    #allocation8 [shape = 'u8[7168]{0}', space=vmem, size = 0x1c00, scoped, tag = 'output window, operand 0, single buffered']
    %8 = vsyncpa [#allocation3], 0
    %9 = vsyncpa [#allocation6], 0
    %10 = vsyncpa [#allocation4], 0
    // Predicated region
    $region2: #{tpu_custom_call.1} parent=1 // pred_check
      _
    $region3: #{tpu_custom_call.1} parent=1 // pred_check_branch
      %12 = sbr.rel (0) target = $region5
    $region4: #{tpu_custom_call.1} parent=1 // pred_region
      %s14 = ssub.s32 16, 16
      %15 = vsyncadd [#allocation3], %s14
      %s17 = sshll.u32 [#allocation2], 4
      %s18 = int_to_ptr.vmem [resolvable:$true] %s17
      %20 = dma.hbm_to_vmem [thread:$0]  %s0, 16, %s18, [#allocation3]
    $region5: #{tpu_custom_call.1} parent=1 // pred_fallthru
      _
    // Predicated region
    $region6: #{tpu_custom_call.1} parent=1 // pred_check
      _
    $region7: #{tpu_custom_call.1} parent=1 // pred_check_branch
      %22 = sbr.rel (0) target = $region9
    $region8: #{tpu_custom_call.1} parent=1 // pred_region
      %s24 = ssub.s32 1792, 1792
      %25 = vsyncadd [#allocation6], %s24
      %s26 = sshll.u32 [#allocation5], 4
      %s27 = int_to_ptr.vmem [resolvable:$true] %s26
      %32 = dma.hbm_to_vmem [thread:$0]  %s1, 1792, %s27, [#allocation6], 448, 448, 28
    $region9: #{tpu_custom_call.1} parent=1 // pred_fallthru
      _
    // Predicated region
    $region10: #{tpu_custom_call.1} parent=1 // pred_check
      _
    $region11: #{tpu_custom_call.1} parent=1 // pred_check_branch
      %34 = sbr.rel (0) target = $region13
    $region12: #{tpu_custom_call.1} parent=1 // pred_region
      %s36 = ssub.s32 112, 112
      %37 = vsyncadd [#allocation6], %s36
      %s39 = sshll.u32 [#allocation7], 4
      %s40 = int_to_ptr.vmem [resolvable:$true] %s39
      %42 = dma.hbm_to_vmem [thread:$0]  %s2, 112, %s40, [#allocation6]
    $region13: #{tpu_custom_call.1} parent=1 // pred_fallthru
      _
    // Predicated region
    $region14: #{tpu_custom_call.1} parent=1 // pred_check
      _
    $region15: #{tpu_custom_call.1} parent=1 // pred_check_branch
      %44 = sbr.rel (0) target = $region17
    $region16: #{tpu_custom_call.1} parent=1 // pred_region
      %45 = dma.done [#allocation3], 16
    $region17: #{tpu_custom_call.1} parent=1 // pred_fallthru
      _
    // Predicated region
    $region18: #{tpu_custom_call.1} parent=1 // pred_check
      _
    $region19: #{tpu_custom_call.1} parent=1 // pred_check_branch
      %47 = sbr.rel (0) target = $region21
    $region20: #{tpu_custom_call.1} parent=1 // pred_region
      %48 = dma.done [#allocation6], 1792
    $region21: #{tpu_custom_call.1} parent=1 // pred_fallthru
      _
    // Predicated region
    $region22: #{tpu_custom_call.1} parent=1 // pred_check
      _
    $region23: #{tpu_custom_call.1} parent=1 // pred_check_branch
      %50 = sbr.rel (0) target = $region25
    $region24: #{tpu_custom_call.1} parent=1 // pred_region
      %51 = dma.done [#allocation6], 112
    $region25: #{tpu_custom_call.1} parent=1 // pred_fallthru
      _
    %v53 = vld [vmem:[#allocation2] sm:$0x1]
    %v54 = vld [vmem:[#allocation5] sm:$0xff]
    %v55 = vld [vmem:[#allocation5 + $0x8] sm:$0xff]
    %v56 = vld [vmem:[#allocation5 + $0x10] sm:$0xff]
    %v57 = vld [vmem:[#allocation5 + $0x18] sm:$0xf]
    %v58 = vld [vmem:[#allocation5 + $0x1c] sm:$0xff]
    %v59 = vld [vmem:[#allocation5 + $0x24] sm:$0xff]
    %v60 = vld [vmem:[#allocation5 + $0x2c] sm:$0xff]
    %v61 = vld [vmem:[#allocation5 + $0x34] sm:$0xf]
    %v62 = vld [vmem:[#allocation5 + $0x38] sm:$0xff]
    %v63 = vld [vmem:[#allocation5 + $0x40] sm:$0xff]
    %v64 = vld [vmem:[#allocation5 + $0x48] sm:$0xff]
    %v65 = vld [vmem:[#allocation5 + $0x50] sm:$0xf]
    %v66 = vld [vmem:[#allocation5 + $0x54] sm:$0xff]
    %v67 = vld [vmem:[#allocation5 + $0x5c] sm:$0xff]
    %v68 = vld [vmem:[#allocation5 + $0x64] sm:$0xff]
    %v69 = vld [vmem:[#allocation5 + $0x6c] sm:$0xf]
    %v70 = vld [vmem:[#allocation7] sm:$0xff]
    %v72 = vlaneseq
    %v73 = vshrl.u32 %v72, 7
    %v74 = vsub.s32 0, %v73
    %v75 = vrot.slane %v70, %v74
    %v76 = vlaneseq
    %v77 = vshrl.u32 %v76, 7
    %v78 = vsub.s32 1, %v77
    %v79 = vrot.slane %v70, %v78
    %v80 = vlaneseq
    %v81 = vshrl.u32 %v80, 7
    %v82 = vsub.s32 2, %v81
    %v83 = vrot.slane %v70, %v82
    %v84 = vlaneseq
    %v85 = vshrl.u32 %v84, 7
    %v86 = vsub.s32 3, %v85
    %v87 = vrot.slane %v70, %v86
    %v88 = vlaneseq
    %v89 = vshrl.u32 %v88, 7
    %v90 = vsub.s32 4, %v89
    %v91 = vrot.slane %v70, %v90
    %v92 = vlaneseq
    %v93 = vshrl.u32 %v92, 7
    %v94 = vsub.s32 5, %v93
    %v95 = vrot.slane %v70, %v94
    %v96 = vlaneseq
    %v97 = vshrl.u32 %v96, 7
    %v98 = vsub.s32 6, %v97
    %v99 = vrot.slane %v70, %v98
    %v123 = vunpack.c.l.b16 %v54
    %v124 = vunpack.c.h.b16 %v54
    %v125 = vunpack.c.l.b16 %v55
    %v126 = vunpack.c.h.b16 %v55
    %v127 = vunpack.c.l.b16 %v56
    %v128 = vunpack.c.h.b16 %v56
    %v129 = vunpack.c.l.b16 %v57
    %v130 = vunpack.c.l.b16 %v58
    %v131 = vunpack.c.h.b16 %v58
    %v132 = vunpack.c.l.b16 %v59
    %v133 = vunpack.c.h.b16 %v59
    %v134 = vunpack.c.l.b16 %v60
    %v135 = vunpack.c.h.b16 %v60
    %v136 = vunpack.c.l.b16 %v61
    %v137 = vunpack.c.l.b16 %v62
    %v138 = vunpack.c.h.b16 %v62
    %v139 = vunpack.c.l.b16 %v63
    %v140 = vunpack.c.h.b16 %v63
    %v141 = vunpack.c.l.b16 %v64
    %v142 = vunpack.c.h.b16 %v64
    %v143 = vunpack.c.l.b16 %v65
    %v144 = vunpack.c.l.b16 %v66
    %v145 = vunpack.c.h.b16 %v66
    %v146 = vunpack.c.l.b16 %v67
    %v147 = vunpack.c.h.b16 %v67
    %v148 = vunpack.c.l.b16 %v68
    %v149 = vunpack.c.h.b16 %v68
    %v150 = vunpack.c.l.b16 %v69
    %v151 = vpack.c.b16 %v130, %v123
    %v152 = vpack.c.b16 %v131, %v124
    %v153 = vpack.c.b16 %v132, %v125
    %v154 = vpack.c.b16 %v133, %v126
    %v155 = vpack.c.b16 %v134, %v127
    %v156 = vpack.c.b16 %v135, %v128
    %v157 = vpack.c.b16 %v136, %v129
    %v158 = vpack.c.b16 %v144, %v137
    %v159 = vpack.c.b16 %v145, %v138
    %v160 = vpack.c.b16 %v146, %v139
    %v161 = vpack.c.b16 %v147, %v140
    %v162 = vpack.c.b16 %v148, %v141
    %v163 = vpack.c.b16 %v149, %v142
    %v164 = vpack.c.b16 %v150, %v143
    %vm179 = vcmask 261120
    %v181 = vsel %vm179, %v53, 0
    %183 = vmatprep.subr.bf16.mxu0 0
    %184 = vmatpush1.bf16.msra.mxu0 0
    %185 = vmatprep.subr.bf16.mxu0 0
    %186 = vmatpush1.bf16.msra.mxu0 0
    %187 = vmatprep.subr.bf16.mxu0 0
    %188 = vmatpush1.bf16.msra.mxu0 0
    %189 = vmatprep.subr.bf16.mxu0 0
    %190 = vmatpush1.bf16.msra.mxu0 0
    %191 = vmatprep.subr.bf16.mxu0 0
    %192 = vmatpush1.bf16.msra.mxu0 0
    %193 = vmatprep.subr.bf16.mxu0 0
    %194 = vmatpush1.bf16.msra.mxu0 0
    %195 = vmatprep.subr.bf16.mxu0 %v159
    %196 = vmatpush1.bf16.msra.mxu0 %v158
    %197 = vmatprep.subr.bf16.mxu0 %v152
    %198 = vmatpush1.bf16.msra.mxu0 %v151
    %199 = vmatprep.subr.bf16.mxu0 0
    %200 = vmatpush2.bf16.msra.mxu0 0
    %201 = vmatprep.subr.bf16.mxu0 0
    %202 = vmatpush2.bf16.msra.mxu0 0
    %203 = vmatprep.subr.bf16.mxu0 0
    %204 = vmatpush2.bf16.msra.mxu0 0
    %205 = vmatprep.subr.bf16.mxu0 0
    %206 = vmatpush2.bf16.msra.mxu0 0
    %207 = vmatprep.subr.bf16.mxu0 0
    %208 = vmatpush2.bf16.msra.mxu0 0
    %209 = vmatprep.subr.bf16.mxu0 0
    %210 = vmatpush2.bf16.msra.mxu0 0
    %211 = vmatprep.subr.bf16.mxu0 0
    %212 = vmatpush2.bf16.msra.mxu0 0
    %213 = vmatprep.subr.bf16.mxu0 0
    %214 = vmatpush2.bf16.msra.mxu0 0
    %215 = vmatprep.mubr.bf16.mxu0 0
    %216 = vmatmul.mubr.bf16.gmra.mxu0 %v181
    %v217 = vpop.f32.mrf.mxu0
    %v218 = vadd.f32 %v75, %v217
    %v219 = vpop.f32.mrf.mxu0
    %v220 = vadd.f32 %v79, %v219
    %v221 = vpop.f32.mrf.mxu0
    %v222 = vpop.f32.mrf.mxu0
    %223 = vdwg.mxu0
    %224 = vmatprep.subr.bf16.mxu0 0
    %225 = vmatpush1.bf16.msra.mxu0 0
    %226 = vmatprep.subr.bf16.mxu0 0
    %227 = vmatpush1.bf16.msra.mxu0 0
    %228 = vmatprep.subr.bf16.mxu0 0
    %229 = vmatpush1.bf16.msra.mxu0 0
    %230 = vmatprep.subr.bf16.mxu0 0
    %231 = vmatpush1.bf16.msra.mxu0 0
    %232 = vmatprep.subr.bf16.mxu0 0
    %233 = vmatpush1.bf16.msra.mxu0 0
    %234 = vmatprep.subr.bf16.mxu0 0
    %235 = vmatpush1.bf16.msra.mxu0 0
    %236 = vmatprep.subr.bf16.mxu0 %v161
    %237 = vmatpush1.bf16.msra.mxu0 %v160
    %238 = vmatprep.subr.bf16.mxu0 %v154
    %239 = vmatpush1.bf16.msra.mxu0 %v153
    %240 = vmatprep.subr.bf16.mxu0 0
    %241 = vmatpush2.bf16.msra.mxu0 0
    %242 = vmatprep.subr.bf16.mxu0 0
    %243 = vmatpush2.bf16.msra.mxu0 0
    %244 = vmatprep.subr.bf16.mxu0 0
    %245 = vmatpush2.bf16.msra.mxu0 0
    %246 = vmatprep.subr.bf16.mxu0 0
    %247 = vmatpush2.bf16.msra.mxu0 0
    %248 = vmatprep.subr.bf16.mxu0 0
    %249 = vmatpush2.bf16.msra.mxu0 0
    %250 = vmatprep.subr.bf16.mxu0 0
    %251 = vmatpush2.bf16.msra.mxu0 0
    %252 = vmatprep.subr.bf16.mxu0 0
    %253 = vmatpush2.bf16.msra.mxu0 0
    %254 = vmatprep.subr.bf16.mxu0 0
    %255 = vmatpush2.bf16.msra.mxu0 0
    %256 = vmatprep.mubr.bf16.mxu0 0
    %257 = vmatmul.mubr.bf16.gmra.mxu0 %v181
    %v258 = vpop.f32.mrf.mxu0
    %v259 = vadd.f32 %v83, %v258
    %v260 = vpop.f32.mrf.mxu0
    %v261 = vadd.f32 %v87, %v260
    %v262 = vpop.f32.mrf.mxu0
    %v263 = vpop.f32.mrf.mxu0
    %264 = vdwg.mxu0
    %265 = vmatprep.subr.bf16.mxu0 0
    %266 = vmatpush1.bf16.msra.mxu0 0
    %267 = vmatprep.subr.bf16.mxu0 0
    %268 = vmatpush1.bf16.msra.mxu0 0
    %269 = vmatprep.subr.bf16.mxu0 0
    %270 = vmatpush1.bf16.msra.mxu0 0
    %271 = vmatprep.subr.bf16.mxu0 0
    %272 = vmatpush1.bf16.msra.mxu0 0
    %273 = vmatprep.subr.bf16.mxu0 0
    %274 = vmatpush1.bf16.msra.mxu0 0
    %275 = vmatprep.subr.bf16.mxu0 0
    %276 = vmatpush1.bf16.msra.mxu0 0
    %277 = vmatprep.subr.bf16.mxu0 %v163
    %278 = vmatpush1.bf16.msra.mxu0 %v162
    %279 = vmatprep.subr.bf16.mxu0 %v156
    %280 = vmatpush1.bf16.msra.mxu0 %v155
    %281 = vmatprep.subr.bf16.mxu0 0
    %282 = vmatpush2.bf16.msra.mxu0 0
    %283 = vmatprep.subr.bf16.mxu0 0
    %284 = vmatpush2.bf16.msra.mxu0 0
    %285 = vmatprep.subr.bf16.mxu0 0
    %286 = vmatpush2.bf16.msra.mxu0 0
    %287 = vmatprep.subr.bf16.mxu0 0
    %288 = vmatpush2.bf16.msra.mxu0 0
    %289 = vmatprep.subr.bf16.mxu0 0
    %290 = vmatpush2.bf16.msra.mxu0 0
    %291 = vmatprep.subr.bf16.mxu0 0
    %292 = vmatpush2.bf16.msra.mxu0 0
    %293 = vmatprep.subr.bf16.mxu0 0
    %294 = vmatpush2.bf16.msra.mxu0 0
    %295 = vmatprep.subr.bf16.mxu0 0
    %296 = vmatpush2.bf16.msra.mxu0 0
    %297 = vmatprep.mubr.bf16.mxu0 0
    %298 = vmatmul.mubr.bf16.gmra.mxu0 %v181
    %v299 = vpop.f32.mrf.mxu0
    %v300 = vadd.f32 %v91, %v299
    %v301 = vpop.f32.mrf.mxu0
    %v302 = vadd.f32 %v95, %v301
    %v303 = vpop.f32.mrf.mxu0
    %v304 = vpop.f32.mrf.mxu0
    %305 = vdwg.mxu0
    %306 = vmatprep.subr.bf16.mxu0 0
    %307 = vmatpush1.bf16.msra.mxu0 0
    %308 = vmatprep.subr.bf16.mxu0 0
    %309 = vmatpush1.bf16.msra.mxu0 0
    %310 = vmatprep.subr.bf16.mxu0 0
    %311 = vmatpush1.bf16.msra.mxu0 0
    %312 = vmatprep.subr.bf16.mxu0 0
    %313 = vmatpush1.bf16.msra.mxu0 0
    %314 = vmatprep.subr.bf16.mxu0 0
    %315 = vmatpush1.bf16.msra.mxu0 0
    %316 = vmatprep.subr.bf16.mxu0 0
    %317 = vmatpush1.bf16.msra.mxu0 0
    %318 = vmatprep.subr.bf16.mxu0 0
    %319 = vmatpush1.bf16.msra.mxu0 %v164
    %320 = vmatprep.subr.bf16.mxu0 0
    %321 = vmatpush1.bf16.msra.mxu0 %v157
    %322 = vmatprep.subr.bf16.mxu0 0
    %323 = vmatpush2.bf16.msra.mxu0 0
    %324 = vmatprep.subr.bf16.mxu0 0
    %325 = vmatpush2.bf16.msra.mxu0 0
    %326 = vmatprep.subr.bf16.mxu0 0
    %327 = vmatpush2.bf16.msra.mxu0 0
    %328 = vmatprep.subr.bf16.mxu0 0
    %329 = vmatpush2.bf16.msra.mxu0 0
    %330 = vmatprep.subr.bf16.mxu0 0
    %331 = vmatpush2.bf16.msra.mxu0 0
    %332 = vmatprep.subr.bf16.mxu0 0
    %333 = vmatpush2.bf16.msra.mxu0 0
    %334 = vmatprep.subr.bf16.mxu0 0
    %335 = vmatpush2.bf16.msra.mxu0 0
    %336 = vmatprep.subr.bf16.mxu0 0
    %337 = vmatpush2.bf16.msra.mxu0 0
    %338 = vmatprep.mubr.bf16.mxu0 0
    %339 = vmatmul.mubr.bf16.gmra.mxu0 %v181
    %v340 = vpop.f32.mrf.mxu0
    %v341 = vadd.f32 %v99, %v340
    %v342 = vpop.f32.mrf.mxu0
    %v343 = vpop.f32.mrf.mxu0
    %v344 = vpop.f32.mrf.mxu0
    %345 = vdwg.mxu0
    %v346 = vmax.f32 %v218, 0.0
    %v347 = vmax.f32 %v220, 0.0
    %v348 = vmax.f32 %v259, 0.0
    %v349 = vmax.f32 %v261, 0.0
    %v350 = vmax.f32 %v300, 0.0
    %v351 = vmax.f32 %v302, 0.0
    %v352 = vmax.f32 %v341, 0.0
    %v360 = vcombine.low %v346, %v347
    %v361 = vcombine.low %v348, %v349
    %v363 = vunpack.c.l.s4 1983009808
    %v364 = vunpack.c.0.s8 %v363
    %v365 = vlaneseq
    %v366 = vshrl.u32 %v365, 7
    %v367 = vsub.s32 %v364, %v366
    %v368 = vrot.slane %v360, %v367
    %v370 = vunpack.c.l.s4 1983009808
    %v371 = vunpack.c.0.s8 %v370
    %v372 = vlaneseq
    %v373 = vshrl.u32 %v372, 7
    %v374 = vsub.s32 %v371, %v373
    %v375 = vrot.slane %v361, %v374
    %v376 = vcombine.low %v368, %v375
    %v377 = vcombine.low %v350, %v351
    %v379 = vunpack.c.l.s4 1983009808
    %v380 = vunpack.c.0.s8 %v379
    %v381 = vlaneseq
    %v382 = vshrl.u32 %v381, 7
    %v383 = vsub.s32 %v380, %v382
    %v384 = vrot.slane %v377, %v383
    %v386 = vunpack.c.l.s4 1983009808
    %v387 = vunpack.c.0.s8 %v386
    %v388 = vlaneseq
    %v389 = vshrl.u32 %v388, 7
    %v390 = vsub.s32 %v387, %v389
    %v391 = vrot.slane %v352, %v390
    %v392 = vcombine.low %v384, %v391
    %395 = vst [vmem:[#allocation8] sm:$0xff] %v376
    %396 = vst [vmem:[#allocation8 + $0x8] sm:$0x3f] %v392
    // Predicated region
    $region26: #{tpu_custom_call.1} parent=1 // pred_check
      _
    $region27: #{tpu_custom_call.1} parent=1 // pred_check_branch
      %398 = sbr.rel (0) target = $region29
    $region28: #{tpu_custom_call.1} parent=1 // pred_region
      %s400 = ssub.s32 224, 224
      %401 = vsyncadd [#allocation4], %s400
      %s403 = sshll.u32 [#allocation8], 4
      %s404 = int_to_ptr.vmem [resolvable:$true] %s403
      %406 = dma.vmem_to_hbm [thread:$0]  %s404, 224, %s3, [#allocation4]
    $region29: #{tpu_custom_call.1} parent=1 // pred_fallthru
      _
    // Predicated region
    $region30: #{tpu_custom_call.1} parent=1 // pred_check
      _
    $region31: #{tpu_custom_call.1} parent=1 // pred_check_branch
      %408 = sbr.rel (0) target = $region33
    $region32: #{tpu_custom_call.1} parent=1 // pred_region
      %409 = dma.done [#allocation4], 224
    $region33: #{tpu_custom_call.1} parent=1 // pred_fallthru
      _
    %410 = vsyncpa [#allocation3], 1
    %411 = vsyncpa [#allocation6], 1
    %412 = vsyncpa [#allocation4], 1

</llo_original>
